<compile_context>
chip_gen: v6e
topology: v6e:2x2x1
jax: 0.10.0
libtpu: 0.0.40
codegen_flags: <defaults>
</compile_context>

<pallas_src>
import jax
import jax.numpy as jnp
from jax.experimental import pallas as pl
from jax.experimental.pallas import tpu as pltpu

_LANE = 128
_MAX_ROWS = 2048            # 2048 * 128 = 256K spatial elements per block
_MAX_TS_FLAT = 131072       # fallback (flat) path tile, multiple of 128
_VMEM_LIMIT = 40 * 1024 * 1024  # > v5e's 16 MiB default scope, < v7x's 64 MiB physical


def _make_dense_kernel(c_in, c_out):
    def kernel(w_sm, b_sm, x_ref, o_ref):
        # w_sm: SMEM (c_out, c_in) f32; b_sm: SMEM (c_out,) f32
        # x_ref: VMEM (1, c_in, R, 128); o_ref: VMEM (1, c_out, R, 128)
        xs = [x_ref[0, ci].astype(jnp.float32) for ci in range(c_in)]  # (R, 128) slabs
        for co in range(c_out):
            acc = w_sm[co, 0] * xs[0]
            for ci in range(1, c_in):
                acc = acc + w_sm[co, ci] * xs[ci]
            o_ref[0, co] = (acc + b_sm[co]).astype(o_ref.dtype)  # direct per-channel store

    return kernel


def _make_flat_kernel(c_in, c_out):
    def kernel(w_sm, b_sm, x_ref, o_ref):
        # x_ref: VMEM (1, c_in, TS); o_ref: VMEM (1, c_out, TS)
        x = x_ref[0].astype(jnp.float32)  # (c_in, TS)
        for co in range(c_out):
            acc = w_sm[co, 0] * x[0:1, :]
            for ci in range(1, c_in):
                acc = acc + w_sm[co, ci] * x[ci:ci + 1, :]
            o_ref[0, co:co + 1, :] = (acc + b_sm[co]).astype(o_ref.dtype)

    return kernel


def _pick_row_tile(rows, n, max_rows):
    """Pick a sublane-row tile: multiple of 8 (or full extent), >=2 total grid steps when possible."""
    if rows <= 8:
        return rows  # full extent along the second-to-last dim is always legal
    r = min(max_rows, rows)
    r = (r // 8) * 8
    # v7x balance: avoid a single-step grid when batch == 1 and there is enough work to split.
    if n == 1 and pl.cdiv(rows, r) < 2 and rows >= 16:
        half = max(8, (((rows + 1) // 2) + 7) // 8 * 8)
        r = min(r, half)
    return r


def output_layer_forward(x, weight, bias, *, max_rows=_MAX_ROWS, max_ts_flat=_MAX_TS_FLAT):
    """x: (N, C_in, D, H, W); weight: (C_out, C_in) or (C_out, C_in, 1, 1, 1); bias: (C_out,)."""
    n, c_in, d, h, w = x.shape
    if weight.ndim == 5:
        assert weight.shape[2:] == (1, 1, 1), "OutputLayer expects a 1x1x1 conv kernel"
        weight = weight.reshape(weight.shape[0], weight.shape[1])
    c_out = weight.shape[0]
    assert weight.shape[1] == c_in and bias.shape == (c_out,)
    s = d * h * w

    w32 = weight.astype(jnp.float32)
    b32 = bias.astype(jnp.float32)

    cost = pl.CostEstimate(
        flops=2 * c_in * c_out * n * s,
        transcendentals=0,
        bytes_accessed=(c_in + c_out) * n * s * x.dtype.itemsize,
    )
    cparams = pltpu.CompilerParams(
        dimension_semantics=("parallel", "parallel"),
        vmem_limit_bytes=_VMEM_LIMIT,
    )

    if s % _LANE == 0:
        # --- dense (sublane + lane) path: (N, C_in, rows, 128), rows tiled in multiples of 8 ---
        rows = s // _LANE
        r = _pick_row_tile(rows, n, max_rows)
        x4 = x.reshape(n, c_in, rows, _LANE)  # contiguous -> free reshape
        grid = (n, pl.cdiv(rows, r))

        out4 = pl.pallas_call(
            _make_dense_kernel(c_in, c_out),
            out_shape=jax.ShapeDtypeStruct((n, c_out, rows, _LANE), x.dtype),
            grid_spec=pltpu.PrefetchScalarGridSpec(
                num_scalar_prefetch=2,  # weight + bias live in SMEM, read as scalars
                grid=grid,
                in_specs=[
                    pl.BlockSpec((1, c_in, r, _LANE),
                                 lambda ni, ri, w_sm, b_sm: (ni, 0, ri, 0)),
                ],
                out_specs=pl.BlockSpec((1, c_out, r, _LANE),
                                       lambda ni, ri, w_sm, b_sm: (ni, 0, ri, 0)),
            ),
            compiler_params=cparams,
            cost_estimate=cost,
        )(w32, b32, x4)
        return out4.reshape(n, c_out, d, h, w)

    # --- fallback flat path for odd spatial sizes (S not a multiple of 128) ---
    x3 = x.reshape(n, c_in, s)
    ts = s if s <= max_ts_flat else max_ts_flat  # multiple of 128 or full extent
    grid = (n, pl.cdiv(s, ts))

    out3 = pl.pallas_call(
        _make_flat_kernel(c_in, c_out),
        out_shape=jax.ShapeDtypeStruct((n, c_out, s), x.dtype),
        grid_spec=pltpu.PrefetchScalarGridSpec(
            num_scalar_prefetch=2,
            grid=grid,
            in_specs=[
                pl.BlockSpec((1, c_in, ts), lambda ni, si, w_sm, b_sm: (ni, 0, si)),
            ],
            out_specs=pl.BlockSpec((1, c_out, ts), lambda ni, si, w_sm, b_sm: (ni, 0, si)),
        ),
        compiler_params=cparams,
        cost_estimate=cost,
    )(w32, b32, x3)
    return out3.reshape(n, c_out, d, h, w)


if __name__ == "__main__":
    key = jax.random.PRNGKey(0)
    k_x, k_w, k_b = jax.random.split(key, 3)

    N, C_IN, N_CLASS = 2, 4, 3
    weight = jax.random.normal(k_w, (N_CLASS, C_IN), dtype=jnp.float32) * 0.1
    bias = jax.random.normal(k_b, (N_CLASS,), dtype=jnp.float32) * 0.1

    def reference(x, w, b):
        return jnp.einsum("ncdhw,oc->nodhw", x, w) + b[None, :, None, None, None]

    # Case 1: S = 512 (multiple of 128) -> dense path, rows=4 full-extent block.
    x1 = jax.random.normal(k_x, (N, C_IN, 8, 8, 8), dtype=jnp.float32)
    y1 = jax.block_until_ready(output_layer_forward(x1, weight, bias))
    assert y1.shape == (N, N_CLASS, 8, 8, 8)
    assert jnp.allclose(y1, reference(x1, weight, bias), atol=1e-5, rtol=1e-5)

    # Case 2: dense path with multiple row tiles and a partial (masked) tail block:
    # S = 3072 -> rows = 24, forced tile of 16 rows -> blocks of 16 + 8 (tail).
    x2 = jax.random.normal(k_x, (1, C_IN, 16, 16, 12), dtype=jnp.float32)
    y2 = jax.block_until_ready(output_layer_forward(x2, weight, bias, max_rows=16))
    assert jnp.allclose(y2, reference(x2, weight, bias), atol=1e-5, rtol=1e-5)

    # Case 3: S = 125 (not a multiple of 128) -> flat fallback path, full-extent block.
    x3 = jax.random.normal(k_x, (N, C_IN, 5, 5, 5), dtype=jnp.float32)
    y3 = jax.block_until_ready(output_layer_forward(x3, weight, bias))
    assert jnp.allclose(y3, reference(x3, weight, bias), atol=1e-5, rtol=1e-5)

    print("KERNEL_OK")
</pallas_src>

<mosaic_0001>
module attributes {stable_mosaic.version = 11 : i64} {
  func.func @kernel(%arg0: i32, %arg1: i32, %arg2: memref<3x4xf32, #tpu.memory_space<smem>>, %arg3: memref<3xf32, #tpu.memory_space<smem>>, %arg4: memref<1x4x4x128xf32, #tpu.memory_space<vmem>>, %arg5: memref<1x3x4x128xf32, #tpu.memory_space<vmem>>) attributes {dimension_semantics = [#tpu.dimension_semantics<parallel>, #tpu.dimension_semantics<parallel>], iteration_bounds = array<i64: 2, 1>, scalar_prefetch = 2 : i64, scratch_operands = 0 : i64, tpu.core_type = #tpu.core_type<tc>, window_params = [{transform_indices = @transform_0, window_bounds = array<i64: 1, 4, 4, 128>}, {transform_indices = @transform_1, window_bounds = array<i64: 1, 3, 4, 128>}]} {
    %c0 = arith.constant 0 : index
    %c0_0 = arith.constant 0 : index
    %c0_1 = arith.constant 0 : index
    %c0_2 = arith.constant 0 : index
    %0 = vector.load %arg4[%c0, %c0_0, %c0_1, %c0_2] : memref<1x4x4x128xf32, #tpu.memory_space<vmem>>, vector<1x1x4x128xf32>
    %1 = vector.shape_cast %0 : vector<1x1x4x128xf32> to vector<4x128xf32>
    %c0_3 = arith.constant 0 : index
    %c1 = arith.constant 1 : index
    %c0_4 = arith.constant 0 : index
    %c0_5 = arith.constant 0 : index
    %2 = vector.load %arg4[%c0_3, %c1, %c0_4, %c0_5] : memref<1x4x4x128xf32, #tpu.memory_space<vmem>>, vector<1x1x4x128xf32>
    %3 = vector.shape_cast %2 : vector<1x1x4x128xf32> to vector<4x128xf32>
    %c0_6 = arith.constant 0 : index
    %c2 = arith.constant 2 : index
    %c0_7 = arith.constant 0 : index
    %c0_8 = arith.constant 0 : index
    %4 = vector.load %arg4[%c0_6, %c2, %c0_7, %c0_8] : memref<1x4x4x128xf32, #tpu.memory_space<vmem>>, vector<1x1x4x128xf32>
    %5 = vector.shape_cast %4 : vector<1x1x4x128xf32> to vector<4x128xf32>
    %c0_9 = arith.constant 0 : index
    %c3 = arith.constant 3 : index
    %c0_10 = arith.constant 0 : index
    %c0_11 = arith.constant 0 : index
    %6 = vector.load %arg4[%c0_9, %c3, %c0_10, %c0_11] : memref<1x4x4x128xf32, #tpu.memory_space<vmem>>, vector<1x1x4x128xf32>
    %7 = vector.shape_cast %6 : vector<1x1x4x128xf32> to vector<4x128xf32>
    %c0_12 = arith.constant 0 : index
    %c0_13 = arith.constant 0 : index
    %8 = memref.load %arg2[%c0_12, %c0_13] : memref<3x4xf32, #tpu.memory_space<smem>>
    %9 = vector.broadcast %8 : f32 to vector<4x128xf32>
    %10 = arith.mulf %9, %1 : vector<4x128xf32>
    %c0_14 = arith.constant 0 : index
    %c1_15 = arith.constant 1 : index
    %11 = memref.load %arg2[%c0_14, %c1_15] : memref<3x4xf32, #tpu.memory_space<smem>>
    %12 = vector.broadcast %11 : f32 to vector<4x128xf32>
    %13 = arith.mulf %12, %3 : vector<4x128xf32>
    %14 = arith.addf %10, %13 : vector<4x128xf32>
    %c0_16 = arith.constant 0 : index
    %c2_17 = arith.constant 2 : index
    %15 = memref.load %arg2[%c0_16, %c2_17] : memref<3x4xf32, #tpu.memory_space<smem>>
    %16 = vector.broadcast %15 : f32 to vector<4x128xf32>
    %17 = arith.mulf %16, %5 : vector<4x128xf32>
    %18 = arith.addf %14, %17 : vector<4x128xf32>
    %c0_18 = arith.constant 0 : index
    %c3_19 = arith.constant 3 : index
    %19 = memref.load %arg2[%c0_18, %c3_19] : memref<3x4xf32, #tpu.memory_space<smem>>
    %20 = vector.broadcast %19 : f32 to vector<4x128xf32>
    %21 = arith.mulf %20, %7 : vector<4x128xf32>
    %22 = arith.addf %18, %21 : vector<4x128xf32>
    %c0_20 = arith.constant 0 : index
    %23 = memref.load %arg3[%c0_20] : memref<3xf32, #tpu.memory_space<smem>>
    %24 = vector.broadcast %23 : f32 to vector<4x128xf32>
    %25 = arith.addf %22, %24 : vector<4x128xf32>
    %c0_21 = arith.constant 0 : index
    %c0_22 = arith.constant 0 : index
    %c0_23 = arith.constant 0 : index
    %c0_24 = arith.constant 0 : index
    %26 = vector.load %arg5[%c0_21, %c0_22, %c0_23, %c0_24] : memref<1x3x4x128xf32, #tpu.memory_space<vmem>>, vector<1x1x4x128xf32>
    %27 = vector.shape_cast %26 : vector<1x1x4x128xf32> to vector<4x128xf32>
    %28 = vector.shape_cast %25 : vector<4x128xf32> to vector<1x1x4x128xf32>
    tpu.vector_store %arg5[%c0_21, %c0_22, %c0_23, %c0_24], %28 {strides = array<i32>} : memref<1x3x4x128xf32, #tpu.memory_space<vmem>>, vector<1x1x4x128xf32>,
    %c1_25 = arith.constant 1 : index
    %c0_26 = arith.constant 0 : index
    %29 = memref.load %arg2[%c1_25, %c0_26] : memref<3x4xf32, #tpu.memory_space<smem>>
    %30 = vector.broadcast %29 : f32 to vector<4x128xf32>
    %31 = arith.mulf %30, %1 : vector<4x128xf32>
    %c1_27 = arith.constant 1 : index
    %c1_28 = arith.constant 1 : index
    %32 = memref.load %arg2[%c1_27, %c1_28] : memref<3x4xf32, #tpu.memory_space<smem>>
    %33 = vector.broadcast %32 : f32 to vector<4x128xf32>
    %34 = arith.mulf %33, %3 : vector<4x128xf32>
    %35 = arith.addf %31, %34 : vector<4x128xf32>
    %c1_29 = arith.constant 1 : index
    %c2_30 = arith.constant 2 : index
    %36 = memref.load %arg2[%c1_29, %c2_30] : memref<3x4xf32, #tpu.memory_space<smem>>
    %37 = vector.broadcast %36 : f32 to vector<4x128xf32>
    %38 = arith.mulf %37, %5 : vector<4x128xf32>
    %39 = arith.addf %35, %38 : vector<4x128xf32>
    %c1_31 = arith.constant 1 : index
    %c3_32 = arith.constant 3 : index
    %40 = memref.load %arg2[%c1_31, %c3_32] : memref<3x4xf32, #tpu.memory_space<smem>>
    %41 = vector.broadcast %40 : f32 to vector<4x128xf32>
    %42 = arith.mulf %41, %7 : vector<4x128xf32>
    %43 = arith.addf %39, %42 : vector<4x128xf32>
    %c1_33 = arith.constant 1 : index
    %44 = memref.load %arg3[%c1_33] : memref<3xf32, #tpu.memory_space<smem>>
    %45 = vector.broadcast %44 : f32 to vector<4x128xf32>
    %46 = arith.addf %43, %45 : vector<4x128xf32>
    %c0_34 = arith.constant 0 : index
    %c1_35 = arith.constant 1 : index
    %c0_36 = arith.constant 0 : index
    %c0_37 = arith.constant 0 : index
    %47 = vector.load %arg5[%c0_34, %c1_35, %c0_36, %c0_37] : memref<1x3x4x128xf32, #tpu.memory_space<vmem>>, vector<1x1x4x128xf32>
    %48 = vector.shape_cast %47 : vector<1x1x4x128xf32> to vector<4x128xf32>
    %49 = vector.shape_cast %46 : vector<4x128xf32> to vector<1x1x4x128xf32>
    tpu.vector_store %arg5[%c0_34, %c1_35, %c0_36, %c0_37], %49 {strides = array<i32>} : memref<1x3x4x128xf32, #tpu.memory_space<vmem>>, vector<1x1x4x128xf32>,
    %c2_38 = arith.constant 2 : index
    %c0_39 = arith.constant 0 : index
    %50 = memref.load %arg2[%c2_38, %c0_39] : memref<3x4xf32, #tpu.memory_space<smem>>
    %51 = vector.broadcast %50 : f32 to vector<4x128xf32>
    %52 = arith.mulf %51, %1 : vector<4x128xf32>
    %c2_40 = arith.constant 2 : index
    %c1_41 = arith.constant 1 : index
    %53 = memref.load %arg2[%c2_40, %c1_41] : memref<3x4xf32, #tpu.memory_space<smem>>
    %54 = vector.broadcast %53 : f32 to vector<4x128xf32>
    %55 = arith.mulf %54, %3 : vector<4x128xf32>
    %56 = arith.addf %52, %55 : vector<4x128xf32>
    %c2_42 = arith.constant 2 : index
    %c2_43 = arith.constant 2 : index
    %57 = memref.load %arg2[%c2_42, %c2_43] : memref<3x4xf32, #tpu.memory_space<smem>>
    %58 = vector.broadcast %57 : f32 to vector<4x128xf32>
    %59 = arith.mulf %58, %5 : vector<4x128xf32>
    %60 = arith.addf %56, %59 : vector<4x128xf32>
    %c2_44 = arith.constant 2 : index
    %c3_45 = arith.constant 3 : index
    %61 = memref.load %arg2[%c2_44, %c3_45] : memref<3x4xf32, #tpu.memory_space<smem>>
    %62 = vector.broadcast %61 : f32 to vector<4x128xf32>
    %63 = arith.mulf %62, %7 : vector<4x128xf32>
    %64 = arith.addf %60, %63 : vector<4x128xf32>
    %c2_46 = arith.constant 2 : index
    %65 = memref.load %arg3[%c2_46] : memref<3xf32, #tpu.memory_space<smem>>
    %66 = vector.broadcast %65 : f32 to vector<4x128xf32>
    %67 = arith.addf %64, %66 : vector<4x128xf32>
    %c0_47 = arith.constant 0 : index
    %c2_48 = arith.constant 2 : index
    %c0_49 = arith.constant 0 : index
    %c0_50 = arith.constant 0 : index
    %68 = vector.load %arg5[%c0_47, %c2_48, %c0_49, %c0_50] : memref<1x3x4x128xf32, #tpu.memory_space<vmem>>, vector<1x1x4x128xf32>
    %69 = vector.shape_cast %68 : vector<1x1x4x128xf32> to vector<4x128xf32>
    %70 = vector.shape_cast %67 : vector<4x128xf32> to vector<1x1x4x128xf32>
    tpu.vector_store %arg5[%c0_47, %c2_48, %c0_49, %c0_50], %70 {strides = array<i32>} : memref<1x3x4x128xf32, #tpu.memory_space<vmem>>, vector<1x1x4x128xf32>,
    return
  }
  func.func @transform_0(%arg0: i32, %arg1: i32, %arg2: memref<3x4xf32, #tpu.memory_space<smem>>, %arg3: memref<3xf32, #tpu.memory_space<smem>>) -> (i32, i32, i32, i32) {
    %c0_i32 = arith.constant 0 : i32
    %c0_i32_0 = arith.constant 0 : i32
    %c0_i32_1 = arith.constant 0 : i32
    return %arg0, %c0_i32, %arg1, %c0_i32_0 : i32, i32, i32, i32
  }
  func.func @transform_1(%arg0: i32, %arg1: i32, %arg2: memref<3x4xf32, #tpu.memory_space<smem>>, %arg3: memref<3xf32, #tpu.memory_space<smem>>) -> (i32, i32, i32, i32) {
    %c0_i32 = arith.constant 0 : i32
    %c0_i32_0 = arith.constant 0 : i32
    %c0_i32_1 = arith.constant 0 : i32
    return %arg0, %c0_i32, %arg1, %c0_i32_0 : i32, i32, i32, i32
  }
}

</mosaic_0001>

<llo_original>
// kernel: tpu_custom_call.1
$region0: #{tpu_custom_call.1}
  #allocation0 [shape = 'u32[]', space=smem, size = 0x4, offset = 0x4, fixed_abs, tag = 'smem constant byte address 0x4 - core index']
  #allocation1 [shape = 'u32[144,128]{1,0:T(1,128)}', space=vmem, size = 0x12000, scoped, tag = 'internal scratch']
  #allocation2 [shape = 's32[1]{0}', space=sflag, size = 0x4, scoped, tag = 'scoped memory for tpu_custom_call.1']
  #allocation3 [shape = 'u8[2048]{0}', space=smem, size = 0x800, scoped, tag = 'prefetched SMEM operand 0']
  #allocation4 [shape = 'u8[512]{0}', space=smem, size = 0x200, scoped, tag = 'prefetched SMEM operand 1']
  %s0 = inlined_call_operand.hbm [shape: f32[3,4], index: 0, kind: input, shape index: {}]
  %s1 = inlined_call_operand.vmem [shape: f32[3], index: 1, kind: input, shape index: {}]
  %s2 = inlined_call_operand.hbm [shape: f32[2,4,4,128], index: 2, kind: input, shape index: {}]
  %s3 = inlined_call_operand.hbm [shape: f32[2,3,4,128], index: 3, kind: output, shape index: {}]
  %s4 = sld [smem:[#allocation0]]
  $region41: #{tpu_custom_call.1} parent=0
    _
  %s6 = ssub.s32 1, %s4
  %s7 = scalar_select 0, %s6, %s4
  %9 = dma.hbm_to_smem %s0, 64, [#allocation3], [#allocation2]
  %s10 = sshll.u32 %s1, 4
  %s11 = int_to_ptr.vmem [resolvable:$true] %s10
  %13 = dma.vmem_to_smem %s11, 16, [#allocation4], [#allocation2]
  %14 = dma.done [#allocation2], 80
  %15 = sfence
  $region1: #{tpu_custom_call.1} parent=0
    #allocation5 [shape = 'u8[16384]{0}', space=vmem, size = 0x4000, scoped, tag = 'input window, operand 2']
    #allocation6 [shape = 's32[2]{0}', space=sflag, size = 0x8, scoped, tag = 'scoped memory for tpu_custom_call.1']
    #allocation7 [shape = 's32[2]{0}', space=sflag, size = 0x8, scoped, tag = 'scoped memory for tpu_custom_call.1']
    #allocation8 [shape = 'u8[12288]{0}', space=vmem, size = 0x3000, scoped, tag = 'output window, operand 0']
    %16 = vsyncpa [#allocation6], 0
    %s17 = scalar_lea.sflag [#allocation6], 1
    %18 = vsyncpa %s17, 0
    %19 = vsyncpa [#allocation7], 0
    %s20 = scalar_lea.sflag [#allocation7], 1
    %21 = vsyncpa %s20, 0
    loop: start=0, step=1, limit=4
    $region2: #{tpu_custom_call.1} parent=1 // loop_pre_header
      _
    $region3: #{tpu_custom_call.1} parent=1 // loop_header
      %s23 = sphi 0, %s27
      %p24 = scmp.ge.s32.totalorder %s23, 4
      %s30 = sphi 0, %s42
      %s31 = sphi 0, %s38
      %s32 = sphi 0, %s30
      %s33 = sphi 0, %s31
      %s34 = sphi 0, %s32
      %s35 = sphi 0, %s33
      %s47 = sphi 0, %s49
      %s50 = sphi 0, %s47
      %s51 = sphi 0, %s50
      %s67 = sphi 0, %s51
      %s75 = sphi 0, %s77
      %s78 = sphi 0, %s75
      %s79 = sphi 0, %s78
      %s95 = sphi 0, %s79
    $region4: #{tpu_custom_call.1} parent=1 // loop_header_branch
      %26 = sbr.rel (%p24) target = $region8
    $region5: #{tpu_custom_call.1} parent=1 // loop_body
      %s28 = ssub.s32 %s23, 1
      %s29 = ssub.s32 %s23, 2
      %s36 = sadd.s32 1, %s31
      %p37 = scmp.ge.s32.totalorder %s36, 1
      %s38 = scalar_select %p37, 0, %s36
      %s39 = sadd.s32 1, %s30
      %s40 = scalar_select %p37, %s39, %s30
      %p41 = scmp.ge.s32.totalorder %s40, 2
      %s42 = scalar_select %p41, 0, %s40
      %s43 = ssub.s32 %s30, %s42
      %s44 = ssub.s32 %s31, %s38
      %s45 = sor.u32 %s43, %s44
      %p46 = scmp.eq.s32.totalorder %s45, 0
      %s48 = sadd.s32 %s47, 1
      %s49 = scalar_select %p46, %s47, %s48
      %p52 = pneg %p46
      %p53 = scmp.eq.s32.totalorder %s23, 1
      %p54 = por %p52, %p53
      %p55 = scmp.ne.s32.totalorder %s47, %s50
      %p56 = scmp.eq.s32.totalorder %s23, 0
      %p57 = por %p55, %p56
      %p58 = scmp.ne.s32.totalorder %s47, %s50
      %p59 = scmp.eq.s32.totalorder %s28, 1
      %p60 = por %p58, %p59
      %p61 = scmp.ne.s32.totalorder %s50, %s51
      %p62 = scmp.eq.s32.totalorder %s28, 0
      %p63 = por %p61, %p62
      %p64 = scmp.ne.s32.totalorder %s50, %s51
      %p65 = scmp.eq.s32.totalorder %s29, 1
      %p66 = por %p64, %p65
      %p68 = scmp.ne.s32.totalorder %s51, %s67
      %p69 = scmp.eq.s32.totalorder %s29, 0
      %p70 = por %p68, %p69
      %s71 = ssub.s32 %s30, %s42
      %s72 = ssub.s32 %s31, %s38
      %s73 = sor.u32 %s71, %s72
      %p74 = scmp.eq.s32.totalorder %s73, 0
      %s76 = sadd.s32 %s75, 1
      %s77 = scalar_select %p74, %s75, %s76
      %p80 = pneg %p74
      %p81 = scmp.eq.s32.totalorder %s23, 1
      %p82 = por %p80, %p81
      %p83 = scmp.ne.s32.totalorder %s75, %s78
      %p84 = scmp.eq.s32.totalorder %s23, 0
      %p85 = por %p83, %p84
      %p86 = scmp.ne.s32.totalorder %s75, %s78
      %p87 = scmp.eq.s32.totalorder %s28, 1
      %p88 = por %p86, %p87
      %p89 = scmp.ne.s32.totalorder %s78, %s79
      %p90 = scmp.eq.s32.totalorder %s28, 0
      %p91 = por %p89, %p90
      %p92 = scmp.ne.s32.totalorder %s78, %s79
      %p93 = scmp.eq.s32.totalorder %s29, 1
      %p94 = por %p92, %p93
      %p96 = scmp.ne.s32.totalorder %s79, %s95
      %p97 = scmp.eq.s32.totalorder %s29, 0
      %p98 = por %p96, %p97
      %p99 = scmp.le.s32.totalorder 1, %s23
      %p100 = scmp.lt.s32.totalorder %s23, 3
      %p101 = pnand %p99, %p100
      %p102 = pneg %p101
      // Predicated region
      $region9: #{tpu_custom_call.1} parent=5 // pred_check
        _
      $region10: #{tpu_custom_call.1} parent=5 // pred_check_branch
        %104 = sbr.rel (%p101) target = $region12
      $region11: #{tpu_custom_call.1} parent=5 // pred_region
        %s105 = ssub.s32 %s23, 1
      $region12: #{tpu_custom_call.1} parent=5 // pred_fallthru
        _
      %p106 = scmp.lt.s32.totalorder %s23, 2
      // Predicated region
      $region13: #{tpu_custom_call.1} parent=5 // pred_check
        %p107 = pneg %p106
      $region14: #{tpu_custom_call.1} parent=5 // pred_check_branch
        %109 = sbr.rel (%p107) target = $region16
      $region15: #{tpu_custom_call.1} parent=5 // pred_region
        // Predicated region
        $region17: #{tpu_custom_call.1} parent=15 // pred_check
          %p110 = pneg %p57
        $region18: #{tpu_custom_call.1} parent=15 // pred_check_branch
          %112 = sbr.rel (%p110) target = $region20
        $region19: #{tpu_custom_call.1} parent=15 // pred_region
          %s113 = sand.u32 %s47, 1
          %s114 = scalar_lea.sflag [#allocation6], %s113
          %s115 = sand.u32 %s47, 1
          %s116 = smul.addr %s115, 16
          %s117 = scalar_lea.vmem [#allocation5], %s116
          %s119 = ssub.s32 256, 256
          %120 = vsyncadd %s114, %s119
          %s121 = smul.addr %s30, 4
          %s122 = sadd.s32 %s31, %s121
          %s123 = smul.addr %s122, 64
          %s124 = scalar_lea.hbm %s2, %s123
          %s125 = sshll.u32 %s117, 4
          %s126 = int_to_ptr.vmem [resolvable:$true] %s125
          %131 = dma.hbm_to_vmem [thread:$0]  %s124, 256, %s126, %s114, 64, 64, 4
        $region20: #{tpu_custom_call.1} parent=15 // pred_fallthru
          _
      $region16: #{tpu_custom_call.1} parent=5 // pred_fallthru
        _
      %p132 = scmp.le.s32.totalorder 1, %s23
      %p133 = scmp.lt.s32.totalorder %s23, 3
      %p134 = pnand %p132, %p133
      %p135 = pneg %p134
      // Predicated region
      $region21: #{tpu_custom_call.1} parent=5 // pred_check
        _
      $region22: #{tpu_custom_call.1} parent=5 // pred_check_branch
        %137 = sbr.rel (%p134) target = $region24
      $region23: #{tpu_custom_call.1} parent=5 // pred_region
        %s138 = ssub.s32 %s23, 1
        %s139 = sand.u32 %s50, 1
        %s140 = scalar_lea.sflag [#allocation6], %s139
        %s141 = sand.u32 %s50, 1
        %s142 = smul.addr %s141, 16
        %s143 = scalar_lea.vmem [#allocation5], %s142
        // Predicated region
        $region25: #{tpu_custom_call.1} parent=23 // pred_check
          %p144 = pneg %p63
        $region26: #{tpu_custom_call.1} parent=23 // pred_check_branch
          %146 = sbr.rel (%p144) target = $region28
        $region27: #{tpu_custom_call.1} parent=23 // pred_region
          %147 = dma.done %s140, 256
        $region28: #{tpu_custom_call.1} parent=23 // pred_fallthru
          _
        %s148 = sand.u32 %s50, 1
        %s149 = scalar_lea.sflag [#allocation6], %s148
        %s150 = sand.u32 %s50, 1
        %s151 = smul.addr %s150, 16
        %s152 = scalar_lea.vmem [#allocation5], %s151
        %p153 = pneg %p63
        %p154 = pneg %p60
        %p155 = pneg %p91
        %p156 = pneg %p88
        %s157 = sand.u32 %s78, 1
        %s158 = scalar_lea.sflag [#allocation7], %s157
        %s159 = sand.u32 %s78, 1
        %s160 = smul.addr %s159, 12
        %s161 = scalar_lea.vmem [#allocation8], %s160
        %v162 = vld [vmem:[%s143] sm:$0xf]
        %s163 = scalar_lea.vmem %s143, 4 [#allocation5]
        %v164 = vld [vmem:[%s163] sm:$0xf]
        %s165 = scalar_lea.vmem %s143, 8 [#allocation5]
        %v166 = vld [vmem:[%s165] sm:$0xf]
        %s167 = scalar_lea.vmem %s143, 12 [#allocation5]
        %v168 = vld [vmem:[%s167] sm:$0xf]
        %s169 = sld [smem:[#allocation3]]
        %v170 = vstv %s169
        %v171 = vmul.f32 %v170, %v162
        %s172 = sld [smem:[#allocation3 + $0x1]]
        %v173 = vstv %s172
        %v174 = vmul.f32 %v173, %v164
        %v175 = vadd.f32 %v171, %v174
        %s176 = sld [smem:[#allocation3 + $0x2]]
        %v177 = vstv %s176
        %v178 = vmul.f32 %v177, %v166
        %v179 = vadd.f32 %v175, %v178
        %s180 = sld [smem:[#allocation3 + $0x3]]
        %v181 = vstv %s180
        %v182 = vmul.f32 %v181, %v168
        %v183 = vadd.f32 %v179, %v182
        %s184 = sld [smem:[#allocation4]]
        %v185 = vstv %s184
        %v186 = vadd.f32 %v183, %v185
        %187 = vst [vmem:[%s161] sm:$0xf] %v186
        %s188 = sld [smem:[#allocation3 + $0x80]]
        %v189 = vstv %s188
        %v190 = vmul.f32 %v189, %v162
        %s191 = sld [smem:[#allocation3 + $0x81]]
        %v192 = vstv %s191
        %v193 = vmul.f32 %v192, %v164
        %v194 = vadd.f32 %v190, %v193
        %s195 = sld [smem:[#allocation3 + $0x82]]
        %v196 = vstv %s195
        %v197 = vmul.f32 %v196, %v166
        %v198 = vadd.f32 %v194, %v197
        %s199 = sld [smem:[#allocation3 + $0x83]]
        %v200 = vstv %s199
        %v201 = vmul.f32 %v200, %v168
        %v202 = vadd.f32 %v198, %v201
        %s203 = sld [smem:[#allocation4 + $0x1]]
        %v204 = vstv %s203
        %v205 = vadd.f32 %v202, %v204
        %s206 = scalar_lea.vmem %s161, 4 [#allocation8]
        %207 = vst [vmem:[%s206] sm:$0xf] %v205
        %s208 = sld [smem:[#allocation3 + $0x100]]
        %v209 = vstv %s208
        %v210 = vmul.f32 %v209, %v162
        %s211 = sld [smem:[#allocation3 + $0x101]]
        %v212 = vstv %s211
        %v213 = vmul.f32 %v212, %v164
        %v214 = vadd.f32 %v210, %v213
        %s215 = sld [smem:[#allocation3 + $0x102]]
        %v216 = vstv %s215
        %v217 = vmul.f32 %v216, %v166
        %v218 = vadd.f32 %v214, %v217
        %s219 = sld [smem:[#allocation3 + $0x103]]
        %v220 = vstv %s219
        %v221 = vmul.f32 %v220, %v168
        %v222 = vadd.f32 %v218, %v221
        %s223 = sld [smem:[#allocation4 + $0x2]]
        %v224 = vstv %s223
        %v225 = vadd.f32 %v222, %v224
        %s226 = scalar_lea.vmem %s161, 8 [#allocation8]
        %227 = vst [vmem:[%s226] sm:$0xf] %v225
        %s228 = sand.u32 %s78, 1
        %s229 = scalar_lea.sflag [#allocation7], %s228
        %s230 = sand.u32 %s78, 1
        %s231 = smul.addr %s230, 12
        %s232 = scalar_lea.vmem [#allocation8], %s231
        // Predicated region
        $region29: #{tpu_custom_call.1} parent=23 // pred_check
          %p233 = pneg %p88
        $region30: #{tpu_custom_call.1} parent=23 // pred_check_branch
          %235 = sbr.rel (%p233) target = $region32
        $region31: #{tpu_custom_call.1} parent=23 // pred_region
          %s237 = ssub.s32 192, 192
          %238 = vsyncadd %s229, %s237
          %s239 = smul.addr %s32, 3
          %s240 = sadd.s32 %s33, %s239
          %s241 = smul.addr %s240, 64
          %s242 = scalar_lea.hbm %s3, %s241
          %s243 = sshll.u32 %s232, 4
          %s244 = int_to_ptr.vmem [resolvable:$true] %s243
          %249 = dma.vmem_to_hbm [thread:$0]  %s244, 192, %s242, %s229, 64, 64, 4
        $region32: #{tpu_custom_call.1} parent=23 // pred_fallthru
          _
      $region24: #{tpu_custom_call.1} parent=5 // pred_fallthru
        _
      %p250 = scmp.le.s32.totalorder 2, %s23
      // Predicated region
      $region33: #{tpu_custom_call.1} parent=5 // pred_check
        %p251 = pneg %p250
      $region34: #{tpu_custom_call.1} parent=5 // pred_check_branch
        %253 = sbr.rel (%p251) target = $region36
      $region35: #{tpu_custom_call.1} parent=5 // pred_region
        %s254 = ssub.s32 %s23, 2
        // Predicated region
        $region37: #{tpu_custom_call.1} parent=35 // pred_check
          %p255 = pneg %p94
        $region38: #{tpu_custom_call.1} parent=35 // pred_check_branch
          %257 = sbr.rel (%p255) target = $region40
        $region39: #{tpu_custom_call.1} parent=35 // pred_region
          %s258 = sand.u32 %s79, 1
          %s259 = scalar_lea.sflag [#allocation7], %s258
          %s260 = sand.u32 %s79, 1
          %s261 = smul.addr %s260, 12
          %s262 = scalar_lea.vmem [#allocation8], %s261
          %263 = dma.done %s259, 192
        $region40: #{tpu_custom_call.1} parent=35 // pred_fallthru
          _
      $region36: #{tpu_custom_call.1} parent=5 // pred_fallthru
        _
    $region6: #{tpu_custom_call.1} parent=1 // loop_footer
      %s27 = sadd.s32 1, %s23
    $region7: #{tpu_custom_call.1} parent=1 // loop_footer_branch
      %22 = sbr.rel target = $region3
    $region8: #{tpu_custom_call.1} parent=1 // loop_exit
      _
    %264 = vsyncpa [#allocation6], 1
    %s265 = scalar_lea.sflag [#allocation6], 1
    %266 = vsyncpa %s265, 1
    %267 = vsyncpa [#allocation7], 1
    %s268 = scalar_lea.sflag [#allocation7], 1
    %269 = vsyncpa %s268, 1

</llo_original>
